<compile_context>
chip_gen: v5e
topology: v5e:2x2
jax: 0.10.0
libtpu: 0.0.40
codegen_flags: <defaults>
</compile_context>

<pallas_src>
import jax
import jax.numpy as jnp
from jax.experimental import pallas as pl
from jax.experimental.pallas import tpu as pltpu


def _round_up(n, m):
    return (n + m - 1) // m * m


def actor_kernel(x_ref,
                 w1_ref, b1_ref, g1_ref, be1_ref,
                 w2_ref, b2_ref, g2_ref, be2_ref,
                 w3_ref, b3_ref, g3_ref, be3_ref,
                 w4_ref, b4_ref,
                 mean_ref):
    """Linear -> ReLU -> LayerNorm (x3) -> Linear -> Tanh for one batch tile."""

    def linear(h, w_ref, b_ref):
        # bf16 operands into the MXU (native rate on v6e/v7x), f32 accumulate,
        # f32 bias add.  The astype is a no-op if h is already bf16.
        return jnp.dot(h.astype(jnp.bfloat16), w_ref[...],
                       preferred_element_type=jnp.float32) + b_ref[...]

    def layer_norm(h, g_ref, be_ref):
        # Feature axis is unpadded, so plain means over the last dim are exact
        # (matches nn.LayerNorm: biased variance, eps=1e-5).
        mu = jnp.mean(h, axis=-1, keepdims=True)
        d = h - mu
        var = jnp.mean(d * d, axis=-1, keepdims=True)
        return d * jax.lax.rsqrt(var + 1e-5) * g_ref[...] + be_ref[...]

    h = x_ref[...]
    h = layer_norm(jnp.maximum(linear(h, w1_ref, b1_ref), 0.0), g1_ref, be1_ref)
    h = layer_norm(jnp.maximum(linear(h, w2_ref, b2_ref), 0.0), g2_ref, be2_ref)
    h = layer_norm(jnp.maximum(linear(h, w3_ref, b3_ref), 0.0), g3_ref, be3_ref)
    mean_ref[...] = jnp.tanh(linear(h, w4_ref, b4_ref))


def prepare_params(params):
    """One-time parameter prep (at init / after each optimizer update):
    cast matmul weights to bf16 so the per-step forward issues no extra casts.
    Biases, LayerNorm affine params and log_std stay f32."""
    out = dict(params)
    for k in ("w1", "w2", "w3", "w4"):
        out[k] = params[k].astype(jnp.bfloat16)
    return out


def _pick_tile_b(B):
    if B <= 128:
        # One small tile; nothing useful to shard / pipeline at this size.
        return _round_up(max(B, 8), 8)
    # >= 4 grid steps so the "parallel" batch axis can shard across v7x's two
    # TensorCores and the input DMA pipeline has work to overlap; cap the tile
    # at 1024 rows to amortize per-step overhead while staying at a few MiB of
    # VMEM on every generation.
    return int(min(1024, max(128, _round_up(pl.cdiv(B, 4), 8))))


def actor_forward(state, params, *, tile_b=None):
    """Returns (mean, std) of the policy Normal distribution.

    state: [B, state_dim] float32 (or bfloat16).  No padding is performed:
    the grid is cdiv(B, tile_b) and the last (partial) tile's garbage rows are
    never written back because the output block is partial too.
    """
    B, state_dim = state.shape
    hidden_dim = params["w1"].shape[1]
    action_dim = params["w4"].shape[1]

    if tile_b is None:
        tile_b = _pick_tile_b(B)

    # No-ops if prepare_params() was already applied.
    w1 = params["w1"].astype(jnp.bfloat16)
    w2 = params["w2"].astype(jnp.bfloat16)
    w3 = params["w3"].astype(jnp.bfloat16)
    w4 = params["w4"].astype(jnp.bfloat16)

    def row_spec(d):
        # Tile over batch only; the (unpadded) feature axis stays whole.
        return pl.BlockSpec((tile_b, d), lambda i: (i, 0))

    def param_spec(shape):
        # Whole (small) parameter array, same block on every grid step.
        return pl.BlockSpec(shape, lambda i: (0,) * len(shape))

    mean = pl.pallas_call(
        actor_kernel,
        out_shape=jax.ShapeDtypeStruct((B, action_dim), jnp.float32),
        grid=(pl.cdiv(B, tile_b),),
        in_specs=[
            row_spec(state_dim),
            param_spec((state_dim, hidden_dim)), param_spec((1, hidden_dim)),
            param_spec((1, hidden_dim)), param_spec((1, hidden_dim)),
            param_spec((hidden_dim, hidden_dim)), param_spec((1, hidden_dim)),
            param_spec((1, hidden_dim)), param_spec((1, hidden_dim)),
            param_spec((hidden_dim, hidden_dim)), param_spec((1, hidden_dim)),
            param_spec((1, hidden_dim)), param_spec((1, hidden_dim)),
            param_spec((hidden_dim, action_dim)), param_spec((1, action_dim)),
        ],
        out_specs=row_spec(action_dim),
        compiler_params=pltpu.CompilerParams(
            dimension_semantics=("parallel",),
            vmem_limit_bytes=32 * 1024 * 1024),
    )(
        state,
        w1, params["b1"], params["g1"], params["be1"],
        w2, params["b2"], params["g2"], params["be2"],
        w3, params["b3"], params["g3"], params["be3"],
        w4, params["b4"],
    )

    # std is state-independent: compute once here, never inside the kernel.
    std = jnp.exp(jnp.clip(params["log_std"], -20.0, 2.0))
    std = jnp.broadcast_to(std.reshape(1, action_dim), mean.shape)
    return mean, std


def init_params(key, state_dim, hidden_dim, action_dim):
    ks = jax.random.split(key, 12)
    scale = 0.1
    p = {
        "w1": scale * jax.random.normal(ks[0], (state_dim, hidden_dim), jnp.float32),
        "b1": scale * jax.random.normal(ks[1], (1, hidden_dim), jnp.float32),
        "g1": 1.0 + scale * jax.random.normal(ks[2], (1, hidden_dim), jnp.float32),
        "be1": scale * jax.random.normal(ks[3], (1, hidden_dim), jnp.float32),
        "w2": scale * jax.random.normal(ks[4], (hidden_dim, hidden_dim), jnp.float32),
        "b2": scale * jax.random.normal(ks[5], (1, hidden_dim), jnp.float32),
        "g2": 1.0 + scale * jax.random.normal(ks[6], (1, hidden_dim), jnp.float32),
        "be2": scale * jax.random.normal(ks[7], (1, hidden_dim), jnp.float32),
        "w3": scale * jax.random.normal(ks[8], (hidden_dim, hidden_dim), jnp.float32),
        "b3": scale * jax.random.normal(ks[9], (1, hidden_dim), jnp.float32),
        "g3": 1.0 + scale * jax.random.normal(ks[10], (1, hidden_dim), jnp.float32),
        "be3": scale * jax.random.normal(ks[11], (1, hidden_dim), jnp.float32),
    }
    k4a, k4b = jax.random.split(jax.random.fold_in(key, 99))
    p["w4"] = scale * jax.random.normal(k4a, (hidden_dim, action_dim), jnp.float32)
    p["b4"] = scale * jax.random.normal(k4b, (1, action_dim), jnp.float32)
    # matches nn.Parameter(torch.ones(action_dim) * -1.0)
    p["log_std"] = jnp.full((action_dim,), -1.0, jnp.float32)
    return p


def _ln_ref(h, g, be):
    mu = jnp.mean(h, axis=-1, keepdims=True)
    var = jnp.mean((h - mu) ** 2, axis=-1, keepdims=True)
    return (h - mu) / jnp.sqrt(var + 1e-5) * g + be


def actor_forward_ref(state, params):
    """Faithful f32 PyTorch math (full-precision weights)."""
    h = state
    h = _ln_ref(jnp.maximum(h @ params["w1"] + params["b1"], 0.0), params["g1"], params["be1"])
    h = _ln_ref(jnp.maximum(h @ params["w2"] + params["b2"], 0.0), params["g2"], params["be2"])
    h = _ln_ref(jnp.maximum(h @ params["w3"] + params["b3"], 0.0), params["g3"], params["be3"])
    mean = jnp.tanh(h @ params["w4"] + params["b4"])
    std = jnp.exp(jnp.clip(params["log_std"], -20.0, 2.0))
    return mean, jnp.broadcast_to(std.reshape(1, -1), mean.shape)


def actor_forward_match(state, params):
    """Same numerics as the kernel: bf16 matmul operands, f32 everything else."""
    def lin(h, w, b):
        return jnp.dot(h.astype(jnp.bfloat16), w.astype(jnp.bfloat16),
                       preferred_element_type=jnp.float32) + b

    h = state
    h = _ln_ref(jnp.maximum(lin(h, params["w1"], params["b1"]), 0.0), params["g1"], params["be1"])
    h = _ln_ref(jnp.maximum(lin(h, params["w2"], params["b2"]), 0.0), params["g2"], params["be2"])
    h = _ln_ref(jnp.maximum(lin(h, params["w3"], params["b3"]), 0.0), params["g3"], params["be3"])
    mean = jnp.tanh(lin(h, params["w4"], params["b4"]))
    std = jnp.exp(jnp.clip(params["log_std"], -20.0, 2.0))
    return mean, jnp.broadcast_to(std.reshape(1, -1), mean.shape)


if __name__ == "__main__":
    key = jax.random.PRNGKey(0)
    B, state_dim, hidden_dim, action_dim = 16, 32, 32, 8

    k_x, k_p = jax.random.split(key)
    state = jax.random.normal(k_x, (B, state_dim), jnp.float32)
    params = init_params(k_p, state_dim, hidden_dim, action_dim)
    kparams = prepare_params(params)   # one-time bf16 weight cast

    mean, std = jax.block_until_ready(jax.jit(actor_forward)(state, kparams))

    mean_m, _ = actor_forward_match(state, params)     # matched precision
    mean_ref, std_ref = actor_forward_ref(state, params)  # full f32 reference

    assert mean.shape == (B, action_dim) and std.shape == (B, action_dim)
    assert bool(jnp.all(jnp.isfinite(mean)))
    assert jnp.allclose(mean, mean_m, atol=5e-4, rtol=5e-4), "mismatch vs matched-precision ref"
    assert jnp.allclose(mean, mean_ref, atol=2e-2, rtol=2e-2), "mismatch vs f32 ref"
    assert jnp.allclose(std, std_ref, atol=1e-6, rtol=1e-6)

    print("KERNEL_OK")
</pallas_src>

<mosaic_0001>
module attributes {stable_mosaic.version = 11 : i64} {
  func.func @actor_kernel(%arg0: i32, %arg1: memref<16x32xf32, #tpu.memory_space<vmem>>, %arg2: memref<32x32xbf16, #tpu.memory_space<vmem>>, %arg3: memref<1x32xf32, #tpu.memory_space<vmem>>, %arg4: memref<1x32xf32, #tpu.memory_space<vmem>>, %arg5: memref<1x32xf32, #tpu.memory_space<vmem>>, %arg6: memref<32x32xbf16, #tpu.memory_space<vmem>>, %arg7: memref<1x32xf32, #tpu.memory_space<vmem>>, %arg8: memref<1x32xf32, #tpu.memory_space<vmem>>, %arg9: memref<1x32xf32, #tpu.memory_space<vmem>>, %arg10: memref<32x32xbf16, #tpu.memory_space<vmem>>, %arg11: memref<1x32xf32, #tpu.memory_space<vmem>>, %arg12: memref<1x32xf32, #tpu.memory_space<vmem>>, %arg13: memref<1x32xf32, #tpu.memory_space<vmem>>, %arg14: memref<32x8xbf16, #tpu.memory_space<vmem>>, %arg15: memref<1x8xf32, #tpu.memory_space<vmem>>, %arg16: memref<16x8xf32, #tpu.memory_space<vmem>>) attributes {dimension_semantics = [#tpu.dimension_semantics<parallel>], iteration_bounds = array<i64: 1>, scalar_prefetch = 0 : i64, scratch_operands = 0 : i64, tpu.core_type = #tpu.core_type<tc>, window_params = [{transform_indices = @transform_0, window_bounds = array<i64: 16, 32>}, {pipeline_mode = #tpu.pipeline_mode<synchronous>, transform_indices = @transform_1, window_bounds = array<i64: 32, 32>}, {pipeline_mode = #tpu.pipeline_mode<synchronous>, transform_indices = @transform_2, window_bounds = array<i64: 1, 32>}, {pipeline_mode = #tpu.pipeline_mode<synchronous>, transform_indices = @transform_3, window_bounds = array<i64: 1, 32>}, {pipeline_mode = #tpu.pipeline_mode<synchronous>, transform_indices = @transform_4, window_bounds = array<i64: 1, 32>}, {pipeline_mode = #tpu.pipeline_mode<synchronous>, transform_indices = @transform_5, window_bounds = array<i64: 32, 32>}, {pipeline_mode = #tpu.pipeline_mode<synchronous>, transform_indices = @transform_6, window_bounds = array<i64: 1, 32>}, {pipeline_mode = #tpu.pipeline_mode<synchronous>, transform_indices = @transform_7, window_bounds = array<i64: 1, 32>}, {pipeline_mode = #tpu.pipeline_mode<synchronous>, transform_indices = @transform_8, window_bounds = array<i64: 1, 32>}, {pipeline_mode = #tpu.pipeline_mode<synchronous>, transform_indices = @transform_9, window_bounds = array<i64: 32, 32>}, {pipeline_mode = #tpu.pipeline_mode<synchronous>, transform_indices = @transform_10, window_bounds = array<i64: 1, 32>}, {pipeline_mode = #tpu.pipeline_mode<synchronous>, transform_indices = @transform_11, window_bounds = array<i64: 1, 32>}, {pipeline_mode = #tpu.pipeline_mode<synchronous>, transform_indices = @transform_12, window_bounds = array<i64: 1, 32>}, {pipeline_mode = #tpu.pipeline_mode<synchronous>, transform_indices = @transform_13, window_bounds = array<i64: 32, 8>}, {pipeline_mode = #tpu.pipeline_mode<synchronous>, transform_indices = @transform_14, window_bounds = array<i64: 1, 8>}, {transform_indices = @transform_15, window_bounds = array<i64: 16, 8>}]} {
    %c0 = arith.constant 0 : index
    %c0_0 = arith.constant 0 : index
    %0 = vector.load %arg1[%c0, %c0_0] : memref<16x32xf32, #tpu.memory_space<vmem>>, vector<16x32xf32>
    %1 = arith.truncf %0 : vector<16x32xf32> to vector<16x32xbf16>
    %c0_1 = arith.constant 0 : index
    %c0_2 = arith.constant 0 : index
    %2 = vector.load %arg2[%c0_1, %c0_2] : memref<32x32xbf16, #tpu.memory_space<vmem>>, vector<32x32xbf16>
    %cst = arith.constant dense<0.000000e+00> : vector<16x32xf32>
    %3 = tpu.matmul %1, %2, %cst {dimension_numbers = #tpu.dot_dimension_numbers<[1], [0], [0], [1], [0, 0, 1, 1], [], []>} : vector<16x32xbf16>, vector<32x32xbf16>, vector<16x32xf32> -> vector<16x32xf32>
    %c0_3 = arith.constant 0 : index
    %c0_4 = arith.constant 0 : index
    %4 = vector.load %arg3[%c0_3, %c0_4] : memref<1x32xf32, #tpu.memory_space<vmem>>, vector<1x32xf32>
    %5 = vector.broadcast %4 : vector<1x32xf32> to vector<16x32xf32>
    %6 = arith.addf %3, %5 : vector<16x32xf32>
    %cst_5 = arith.constant 0.000000e+00 : f32
    %7 = vector.broadcast %cst_5 : f32 to vector<16x32xf32>
    %8 = arith.maximumf %6, %7 : vector<16x32xf32>
    %cst_6 = arith.constant dense<0.000000e+00> : vector<16xf32>
    %9 = vector.multi_reduction <add>, %8, %cst_6 [1] : vector<16x32xf32> to vector<16xf32>
    %10 = vector.shape_cast %9 : vector<16xf32> to vector<16x1xf32>
    %cst_7 = arith.constant 3.200000e+01 : f32
    %11 = vector.broadcast %cst_7 : f32 to vector<16x1xf32>
    %12 = arith.divf %10, %11 : vector<16x1xf32>
    %13 = vector.broadcast %12 : vector<16x1xf32> to vector<16x32xf32>
    %14 = arith.subf %8, %13 : vector<16x32xf32>
    %15 = arith.mulf %14, %14 : vector<16x32xf32>
    %cst_8 = arith.constant dense<0.000000e+00> : vector<16xf32>
    %16 = vector.multi_reduction <add>, %15, %cst_8 [1] : vector<16x32xf32> to vector<16xf32>
    %17 = vector.shape_cast %16 : vector<16xf32> to vector<16x1xf32>
    %cst_9 = arith.constant 3.200000e+01 : f32
    %18 = vector.broadcast %cst_9 : f32 to vector<16x1xf32>
    %19 = arith.divf %17, %18 : vector<16x1xf32>
    %cst_10 = arith.constant 9.99999974E-6 : f32
    %20 = vector.broadcast %cst_10 : f32 to vector<16x1xf32>
    %21 = arith.addf %19, %20 : vector<16x1xf32>
    %22 = math.rsqrt %21 : vector<16x1xf32>
    %23 = vector.broadcast %22 : vector<16x1xf32> to vector<16x32xf32>
    %24 = arith.mulf %14, %23 : vector<16x32xf32>
    %c0_11 = arith.constant 0 : index
    %c0_12 = arith.constant 0 : index
    %25 = vector.load %arg4[%c0_11, %c0_12] : memref<1x32xf32, #tpu.memory_space<vmem>>, vector<1x32xf32>
    %26 = vector.broadcast %25 : vector<1x32xf32> to vector<16x32xf32>
    %27 = arith.mulf %24, %26 : vector<16x32xf32>
    %c0_13 = arith.constant 0 : index
    %c0_14 = arith.constant 0 : index
    %28 = vector.load %arg5[%c0_13, %c0_14] : memref<1x32xf32, #tpu.memory_space<vmem>>, vector<1x32xf32>
    %29 = vector.broadcast %28 : vector<1x32xf32> to vector<16x32xf32>
    %30 = arith.addf %27, %29 : vector<16x32xf32>
    %31 = arith.truncf %30 : vector<16x32xf32> to vector<16x32xbf16>
    %c0_15 = arith.constant 0 : index
    %c0_16 = arith.constant 0 : index
    %32 = vector.load %arg6[%c0_15, %c0_16] : memref<32x32xbf16, #tpu.memory_space<vmem>>, vector<32x32xbf16>
    %cst_17 = arith.constant dense<0.000000e+00> : vector<16x32xf32>
    %33 = tpu.matmul %31, %32, %cst_17 {dimension_numbers = #tpu.dot_dimension_numbers<[1], [0], [0], [1], [0, 0, 1, 1], [], []>} : vector<16x32xbf16>, vector<32x32xbf16>, vector<16x32xf32> -> vector<16x32xf32>
    %c0_18 = arith.constant 0 : index
    %c0_19 = arith.constant 0 : index
    %34 = vector.load %arg7[%c0_18, %c0_19] : memref<1x32xf32, #tpu.memory_space<vmem>>, vector<1x32xf32>
    %35 = vector.broadcast %34 : vector<1x32xf32> to vector<16x32xf32>
    %36 = arith.addf %33, %35 : vector<16x32xf32>
    %cst_20 = arith.constant 0.000000e+00 : f32
    %37 = vector.broadcast %cst_20 : f32 to vector<16x32xf32>
    %38 = arith.maximumf %36, %37 : vector<16x32xf32>
    %cst_21 = arith.constant dense<0.000000e+00> : vector<16xf32>
    %39 = vector.multi_reduction <add>, %38, %cst_21 [1] : vector<16x32xf32> to vector<16xf32>
    %40 = vector.shape_cast %39 : vector<16xf32> to vector<16x1xf32>
    %cst_22 = arith.constant 3.200000e+01 : f32
    %41 = vector.broadcast %cst_22 : f32 to vector<16x1xf32>
    %42 = arith.divf %40, %41 : vector<16x1xf32>
    %43 = vector.broadcast %42 : vector<16x1xf32> to vector<16x32xf32>
    %44 = arith.subf %38, %43 : vector<16x32xf32>
    %45 = arith.mulf %44, %44 : vector<16x32xf32>
    %cst_23 = arith.constant dense<0.000000e+00> : vector<16xf32>
    %46 = vector.multi_reduction <add>, %45, %cst_23 [1] : vector<16x32xf32> to vector<16xf32>
    %47 = vector.shape_cast %46 : vector<16xf32> to vector<16x1xf32>
    %cst_24 = arith.constant 3.200000e+01 : f32
    %48 = vector.broadcast %cst_24 : f32 to vector<16x1xf32>
    %49 = arith.divf %47, %48 : vector<16x1xf32>
    %cst_25 = arith.constant 9.99999974E-6 : f32
    %50 = vector.broadcast %cst_25 : f32 to vector<16x1xf32>
    %51 = arith.addf %49, %50 : vector<16x1xf32>
    %52 = math.rsqrt %51 : vector<16x1xf32>
    %53 = vector.broadcast %52 : vector<16x1xf32> to vector<16x32xf32>
    %54 = arith.mulf %44, %53 : vector<16x32xf32>
    %c0_26 = arith.constant 0 : index
    %c0_27 = arith.constant 0 : index
    %55 = vector.load %arg8[%c0_26, %c0_27] : memref<1x32xf32, #tpu.memory_space<vmem>>, vector<1x32xf32>
    %56 = vector.broadcast %55 : vector<1x32xf32> to vector<16x32xf32>
    %57 = arith.mulf %54, %56 : vector<16x32xf32>
    %c0_28 = arith.constant 0 : index
    %c0_29 = arith.constant 0 : index
    %58 = vector.load %arg9[%c0_28, %c0_29] : memref<1x32xf32, #tpu.memory_space<vmem>>, vector<1x32xf32>
    %59 = vector.broadcast %58 : vector<1x32xf32> to vector<16x32xf32>
    %60 = arith.addf %57, %59 : vector<16x32xf32>
    %61 = arith.truncf %60 : vector<16x32xf32> to vector<16x32xbf16>
    %c0_30 = arith.constant 0 : index
    %c0_31 = arith.constant 0 : index
    %62 = vector.load %arg10[%c0_30, %c0_31] : memref<32x32xbf16, #tpu.memory_space<vmem>>, vector<32x32xbf16>
    %cst_32 = arith.constant dense<0.000000e+00> : vector<16x32xf32>
    %63 = tpu.matmul %61, %62, %cst_32 {dimension_numbers = #tpu.dot_dimension_numbers<[1], [0], [0], [1], [0, 0, 1, 1], [], []>} : vector<16x32xbf16>, vector<32x32xbf16>, vector<16x32xf32> -> vector<16x32xf32>
    %c0_33 = arith.constant 0 : index
    %c0_34 = arith.constant 0 : index
    %64 = vector.load %arg11[%c0_33, %c0_34] : memref<1x32xf32, #tpu.memory_space<vmem>>, vector<1x32xf32>
    %65 = vector.broadcast %64 : vector<1x32xf32> to vector<16x32xf32>
    %66 = arith.addf %63, %65 : vector<16x32xf32>
    %cst_35 = arith.constant 0.000000e+00 : f32
    %67 = vector.broadcast %cst_35 : f32 to vector<16x32xf32>
    %68 = arith.maximumf %66, %67 : vector<16x32xf32>
    %cst_36 = arith.constant dense<0.000000e+00> : vector<16xf32>
    %69 = vector.multi_reduction <add>, %68, %cst_36 [1] : vector<16x32xf32> to vector<16xf32>
    %70 = vector.shape_cast %69 : vector<16xf32> to vector<16x1xf32>
    %cst_37 = arith.constant 3.200000e+01 : f32
    %71 = vector.broadcast %cst_37 : f32 to vector<16x1xf32>
    %72 = arith.divf %70, %71 : vector<16x1xf32>
    %73 = vector.broadcast %72 : vector<16x1xf32> to vector<16x32xf32>
    %74 = arith.subf %68, %73 : vector<16x32xf32>
    %75 = arith.mulf %74, %74 : vector<16x32xf32>
    %cst_38 = arith.constant dense<0.000000e+00> : vector<16xf32>
    %76 = vector.multi_reduction <add>, %75, %cst_38 [1] : vector<16x32xf32> to vector<16xf32>
    %77 = vector.shape_cast %76 : vector<16xf32> to vector<16x1xf32>
    %cst_39 = arith.constant 3.200000e+01 : f32
    %78 = vector.broadcast %cst_39 : f32 to vector<16x1xf32>
    %79 = arith.divf %77, %78 : vector<16x1xf32>
    %cst_40 = arith.constant 9.99999974E-6 : f32
    %80 = vector.broadcast %cst_40 : f32 to vector<16x1xf32>
    %81 = arith.addf %79, %80 : vector<16x1xf32>
    %82 = math.rsqrt %81 : vector<16x1xf32>
    %83 = vector.broadcast %82 : vector<16x1xf32> to vector<16x32xf32>
    %84 = arith.mulf %74, %83 : vector<16x32xf32>
    %c0_41 = arith.constant 0 : index
    %c0_42 = arith.constant 0 : index
    %85 = vector.load %arg12[%c0_41, %c0_42] : memref<1x32xf32, #tpu.memory_space<vmem>>, vector<1x32xf32>
    %86 = vector.broadcast %85 : vector<1x32xf32> to vector<16x32xf32>
    %87 = arith.mulf %84, %86 : vector<16x32xf32>
    %c0_43 = arith.constant 0 : index
    %c0_44 = arith.constant 0 : index
    %88 = vector.load %arg13[%c0_43, %c0_44] : memref<1x32xf32, #tpu.memory_space<vmem>>, vector<1x32xf32>
    %89 = vector.broadcast %88 : vector<1x32xf32> to vector<16x32xf32>
    %90 = arith.addf %87, %89 : vector<16x32xf32>
    %91 = arith.truncf %90 : vector<16x32xf32> to vector<16x32xbf16>
    %c0_45 = arith.constant 0 : index
    %c0_46 = arith.constant 0 : index
    %92 = vector.load %arg14[%c0_45, %c0_46] : memref<32x8xbf16, #tpu.memory_space<vmem>>, vector<32x8xbf16>
    %cst_47 = arith.constant dense<0.000000e+00> : vector<16x8xf32>
    %93 = tpu.matmul %91, %92, %cst_47 {dimension_numbers = #tpu.dot_dimension_numbers<[1], [0], [0], [1], [0, 0, 1, 1], [], []>} : vector<16x32xbf16>, vector<32x8xbf16>, vector<16x8xf32> -> vector<16x8xf32>
    %c0_48 = arith.constant 0 : index
    %c0_49 = arith.constant 0 : index
    %94 = vector.load %arg15[%c0_48, %c0_49] : memref<1x8xf32, #tpu.memory_space<vmem>>, vector<1x8xf32>
    %95 = vector.broadcast %94 : vector<1x8xf32> to vector<16x8xf32>
    %96 = arith.addf %93, %95 : vector<16x8xf32>
    %97 = math.tanh %96 : vector<16x8xf32>
    %c0_50 = arith.constant 0 : index
    %c0_51 = arith.constant 0 : index
    %98 = vector.load %arg16[%c0_50, %c0_51] : memref<16x8xf32, #tpu.memory_space<vmem>>, vector<16x8xf32>
    tpu.vector_store %arg16[%c0_50, %c0_51], %97 {strides = array<i32>} : memref<16x8xf32, #tpu.memory_space<vmem>>, vector<16x8xf32>,
    return
  }
  func.func @transform_0(%arg0: i32) -> (i32, i32) {
    %c0_i32 = arith.constant 0 : i32
    %c0_i32_0 = arith.constant 0 : i32
    return %arg0, %c0_i32 : i32, i32
  }
  func.func @transform_1(%arg0: i32) -> (i32, i32) {
    %c0_i32 = arith.constant 0 : i32
    %c0_i32_0 = arith.constant 0 : i32
    %c0_i32_1 = arith.constant 0 : i32
    return %c0_i32, %c0_i32_0 : i32, i32
  }
  func.func @transform_2(%arg0: i32) -> (i32, i32) {
    %c0_i32 = arith.constant 0 : i32
    %c0_i32_0 = arith.constant 0 : i32
    %c0_i32_1 = arith.constant 0 : i32
    return %c0_i32, %c0_i32_0 : i32, i32
  }
  func.func @transform_3(%arg0: i32) -> (i32, i32) {
    %c0_i32 = arith.constant 0 : i32
    %c0_i32_0 = arith.constant 0 : i32
    %c0_i32_1 = arith.constant 0 : i32
    return %c0_i32, %c0_i32_0 : i32, i32
  }
  func.func @transform_4(%arg0: i32) -> (i32, i32) {
    %c0_i32 = arith.constant 0 : i32
    %c0_i32_0 = arith.constant 0 : i32
    %c0_i32_1 = arith.constant 0 : i32
    return %c0_i32, %c0_i32_0 : i32, i32
  }
  func.func @transform_5(%arg0: i32) -> (i32, i32) {
    %c0_i32 = arith.constant 0 : i32
    %c0_i32_0 = arith.constant 0 : i32
    %c0_i32_1 = arith.constant 0 : i32
    return %c0_i32, %c0_i32_0 : i32, i32
  }
  func.func @transform_6(%arg0: i32) -> (i32, i32) {
    %c0_i32 = arith.constant 0 : i32
    %c0_i32_0 = arith.constant 0 : i32
    %c0_i32_1 = arith.constant 0 : i32
    return %c0_i32, %c0_i32_0 : i32, i32
  }
  func.func @transform_7(%arg0: i32) -> (i32, i32) {
    %c0_i32 = arith.constant 0 : i32
    %c0_i32_0 = arith.constant 0 : i32
    %c0_i32_1 = arith.constant 0 : i32
    return %c0_i32, %c0_i32_0 : i32, i32
  }
  func.func @transform_8(%arg0: i32) -> (i32, i32) {
    %c0_i32 = arith.constant 0 : i32
    %c0_i32_0 = arith.constant 0 : i32
    %c0_i32_1 = arith.constant 0 : i32
    return %c0_i32, %c0_i32_0 : i32, i32
  }
  func.func @transform_9(%arg0: i32) -> (i32, i32) {
    %c0_i32 = arith.constant 0 : i32
    %c0_i32_0 = arith.constant 0 : i32
    %c0_i32_1 = arith.constant 0 : i32
    return %c0_i32, %c0_i32_0 : i32, i32
  }
  func.func @transform_10(%arg0: i32) -> (i32, i32) {
    %c0_i32 = arith.constant 0 : i32
    %c0_i32_0 = arith.constant 0 : i32
    %c0_i32_1 = arith.constant 0 : i32
    return %c0_i32, %c0_i32_0 : i32, i32
  }
  func.func @transform_11(%arg0: i32) -> (i32, i32) {
    %c0_i32 = arith.constant 0 : i32
    %c0_i32_0 = arith.constant 0 : i32
    %c0_i32_1 = arith.constant 0 : i32
    return %c0_i32, %c0_i32_0 : i32, i32
  }
  func.func @transform_12(%arg0: i32) -> (i32, i32) {
    %c0_i32 = arith.constant 0 : i32
    %c0_i32_0 = arith.constant 0 : i32
    %c0_i32_1 = arith.constant 0 : i32
    return %c0_i32, %c0_i32_0 : i32, i32
  }
  func.func @transform_13(%arg0: i32) -> (i32, i32) {
    %c0_i32 = arith.constant 0 : i32
    %c0_i32_0 = arith.constant 0 : i32
    %c0_i32_1 = arith.constant 0 : i32
    return %c0_i32, %c0_i32_0 : i32, i32
  }
  func.func @transform_14(%arg0: i32) -> (i32, i32) {
    %c0_i32 = arith.constant 0 : i32
    %c0_i32_0 = arith.constant 0 : i32
    %c0_i32_1 = arith.constant 0 : i32
    return %c0_i32, %c0_i32_0 : i32, i32
  }
  func.func @transform_15(%arg0: i32) -> (i32, i32) {
    %c0_i32 = arith.constant 0 : i32
    %c0_i32_0 = arith.constant 0 : i32
    return %arg0, %c0_i32 : i32, i32
  }
}

</mosaic_0001>

<llo_original>
// kernel: actor_forward.1
$region0: #{actor_forward.1}
  #allocation0 [shape = 'u32[]', space=smem, size = 0x4, offset = 0x4, fixed_abs, tag = 'smem constant byte address 0x4 - core index']
  #allocation1 [shape = 'u32[72,128]{1,0:T(1,128)}', space=vmem, size = 0x9000, scoped, tag = 'internal scratch']
  %s0 = inlined_call_operand.vmem [shape: f32[16,32], index: 0, kind: input, shape index: {}]
  %s1 = inlined_call_operand.hbm [shape: bf16[32,32], index: 1, kind: input, shape index: {}]
  %s2 = inlined_call_operand.vmem [shape: f32[1,32], index: 2, kind: input, shape index: {}]
  %s3 = inlined_call_operand.vmem [shape: f32[1,32], index: 3, kind: input, shape index: {}]
  %s4 = inlined_call_operand.vmem [shape: f32[1,32], index: 4, kind: input, shape index: {}]
  %s5 = inlined_call_operand.hbm [shape: bf16[32,32], index: 5, kind: input, shape index: {}]
  %s6 = inlined_call_operand.vmem [shape: f32[1,32], index: 6, kind: input, shape index: {}]
  %s7 = inlined_call_operand.vmem [shape: f32[1,32], index: 7, kind: input, shape index: {}]
  %s8 = inlined_call_operand.vmem [shape: f32[1,32], index: 8, kind: input, shape index: {}]
  %s9 = inlined_call_operand.hbm [shape: bf16[32,32], index: 9, kind: input, shape index: {}]
  %s10 = inlined_call_operand.vmem [shape: f32[1,32], index: 10, kind: input, shape index: {}]
  %s11 = inlined_call_operand.hbm [shape: f32[1,32], index: 11, kind: input, shape index: {}]
  %s12 = inlined_call_operand.hbm [shape: f32[1,32], index: 12, kind: input, shape index: {}]
  %s13 = inlined_call_operand.vmem [shape: bf16[32,8], index: 13, kind: input, shape index: {}]
  %s14 = inlined_call_operand.vmem [shape: f32[1,8], index: 14, kind: input, shape index: {}]
  %s15 = inlined_call_operand.vmem [shape: f32[16,8], index: 15, kind: output, shape index: {}]
  %s16 = sld [smem:[#allocation0]]
  $region90: #{actor_forward.1} parent=0
    _
  %s18 = ssub.s32 1, %s16
  %s19 = scalar_select 0, %s18, %s16
  $region1: #{actor_forward.1} parent=0
    #allocation2 [shape = 'u8[8192]{0}', space=vmem, size = 0x2000, scoped, tag = 'input window, operand 1, single buffered']
    #allocation3 [shape = 's32[1]{0}', space=sflag, size = 0x4, scoped, tag = 'scoped memory for actor_forward.1']
    #allocation4 [shape = 'u8[8192]{0}', space=vmem, size = 0x2000, scoped, tag = 'input window, operand 5, single buffered']
    #allocation5 [shape = 's32[1]{0}', space=sflag, size = 0x4, scoped, tag = 'scoped memory for actor_forward.1']
    #allocation6 [shape = 'u8[8192]{0}', space=vmem, size = 0x2000, scoped, tag = 'input window, operand 9, single buffered']
    #allocation7 [shape = 'u8[512]{0}', space=vmem, size = 0x400, scoped, tag = 'input window, operand 11, single buffered']
    #allocation8 [shape = 's32[1]{0}', space=sflag, size = 0x4, scoped, tag = 'scoped memory for actor_forward.1']
    #allocation9 [shape = 'u8[512]{0}', space=vmem, size = 0x400, scoped, tag = 'input window, operand 12, single buffered']
    %20 = vsyncpa [#allocation3], 0
    %21 = vsyncpa [#allocation5], 0
    %22 = vsyncpa [#allocation8], 0
    // Predicated region
    $region2: #{actor_forward.1} parent=1 // pred_check
      _
    $region3: #{actor_forward.1} parent=1 // pred_check_branch
      %24 = sbr.rel (0) target = $region5
    $region4: #{actor_forward.1} parent=1 // pred_region
      _
    $region5: #{actor_forward.1} parent=1 // pred_fallthru
      _
    // Predicated region
    $region6: #{actor_forward.1} parent=1 // pred_check
      _
    $region7: #{actor_forward.1} parent=1 // pred_check_branch
      %26 = sbr.rel (0) target = $region9
    $region8: #{actor_forward.1} parent=1 // pred_region
      %28 = vsyncadd [#allocation3], 0
      %s29 = sshll.u32 %s1, 4
      %s30 = int_to_ptr.hbm [resolvable:$true] %s29
      %s31 = sshll.u32 [#allocation2], 4
      %s32 = int_to_ptr.vmem [resolvable:$true] %s31
      %37 = dma.hbm_to_vmem [thread:$0]  %s30, 256, %s32, [#allocation3], 64, 64, 4
    $region9: #{actor_forward.1} parent=1 // pred_fallthru
      _
    // Predicated region
    $region10: #{actor_forward.1} parent=1 // pred_check
      _
    $region11: #{actor_forward.1} parent=1 // pred_check_branch
      %39 = sbr.rel (0) target = $region13
    $region12: #{actor_forward.1} parent=1 // pred_region
      _
    $region13: #{actor_forward.1} parent=1 // pred_fallthru
      _
    // Predicated region
    $region14: #{actor_forward.1} parent=1 // pred_check
      _
    $region15: #{actor_forward.1} parent=1 // pred_check_branch
      %41 = sbr.rel (0) target = $region17
    $region16: #{actor_forward.1} parent=1 // pred_region
      _
    $region17: #{actor_forward.1} parent=1 // pred_fallthru
      _
    // Predicated region
    $region18: #{actor_forward.1} parent=1 // pred_check
      _
    $region19: #{actor_forward.1} parent=1 // pred_check_branch
      %43 = sbr.rel (0) target = $region21
    $region20: #{actor_forward.1} parent=1 // pred_region
      _
    $region21: #{actor_forward.1} parent=1 // pred_fallthru
      _
    // Predicated region
    $region22: #{actor_forward.1} parent=1 // pred_check
      _
    $region23: #{actor_forward.1} parent=1 // pred_check_branch
      %45 = sbr.rel (0) target = $region25
    $region24: #{actor_forward.1} parent=1 // pred_region
      %47 = vsyncadd [#allocation5], 0
      %s48 = sshll.u32 %s5, 4
      %s49 = int_to_ptr.hbm [resolvable:$true] %s48
      %s50 = sshll.u32 [#allocation4], 4
      %s51 = int_to_ptr.vmem [resolvable:$true] %s50
      %56 = dma.hbm_to_vmem [thread:$0]  %s49, 256, %s51, [#allocation5], 64, 64, 4
    $region25: #{actor_forward.1} parent=1 // pred_fallthru
      _
    // Predicated region
    $region26: #{actor_forward.1} parent=1 // pred_check
      _
    $region27: #{actor_forward.1} parent=1 // pred_check_branch
      %58 = sbr.rel (0) target = $region29
    $region28: #{actor_forward.1} parent=1 // pred_region
      _
    $region29: #{actor_forward.1} parent=1 // pred_fallthru
      _
    // Predicated region
    $region30: #{actor_forward.1} parent=1 // pred_check
      _
    $region31: #{actor_forward.1} parent=1 // pred_check_branch
      %60 = sbr.rel (0) target = $region33
    $region32: #{actor_forward.1} parent=1 // pred_region
      _
    $region33: #{actor_forward.1} parent=1 // pred_fallthru
      _
    // Predicated region
    $region34: #{actor_forward.1} parent=1 // pred_check
      _
    $region35: #{actor_forward.1} parent=1 // pred_check_branch
      %62 = sbr.rel (0) target = $region37
    $region36: #{actor_forward.1} parent=1 // pred_region
      _
    $region37: #{actor_forward.1} parent=1 // pred_fallthru
      _
    // Predicated region
    $region38: #{actor_forward.1} parent=1 // pred_check
      _
    $region39: #{actor_forward.1} parent=1 // pred_check_branch
      %64 = sbr.rel (0) target = $region41
    $region40: #{actor_forward.1} parent=1 // pred_region
      %66 = vsyncadd [#allocation5], 0
      %s67 = sshll.u32 %s9, 4
      %s68 = int_to_ptr.hbm [resolvable:$true] %s67
      %s69 = sshll.u32 [#allocation6], 4
      %s70 = int_to_ptr.vmem [resolvable:$true] %s69
      %75 = dma.hbm_to_vmem [thread:$0]  %s68, 256, %s70, [#allocation5], 64, 64, 4
    $region41: #{actor_forward.1} parent=1 // pred_fallthru
      _
    // Predicated region
    $region42: #{actor_forward.1} parent=1 // pred_check
      _
    $region43: #{actor_forward.1} parent=1 // pred_check_branch
      %77 = sbr.rel (0) target = $region45
    $region44: #{actor_forward.1} parent=1 // pred_region
      _
    $region45: #{actor_forward.1} parent=1 // pred_fallthru
      _
    // Predicated region
    $region46: #{actor_forward.1} parent=1 // pred_check
      _
    $region47: #{actor_forward.1} parent=1 // pred_check_branch
      %79 = sbr.rel (0) target = $region49
    $region48: #{actor_forward.1} parent=1 // pred_region
      %81 = vsyncadd [#allocation8], 0
      %s83 = sshll.u32 %s11, 4
      %s84 = int_to_ptr.hbm [resolvable:$true] %s83
      %s85 = sshll.u32 [#allocation7], 4
      %s86 = int_to_ptr.vmem [resolvable:$true] %s85
      %88 = dma.hbm_to_vmem [thread:$0]  %s84, 16, %s86, [#allocation8]
    $region49: #{actor_forward.1} parent=1 // pred_fallthru
      _
    // Predicated region
    $region50: #{actor_forward.1} parent=1 // pred_check
      _
    $region51: #{actor_forward.1} parent=1 // pred_check_branch
      %90 = sbr.rel (0) target = $region53
    $region52: #{actor_forward.1} parent=1 // pred_region
      %92 = vsyncadd [#allocation8], 0
      %s94 = sshll.u32 %s12, 4
      %s95 = int_to_ptr.hbm [resolvable:$true] %s94
      %s96 = sshll.u32 [#allocation9], 4
      %s97 = int_to_ptr.vmem [resolvable:$true] %s96
      %99 = dma.hbm_to_vmem [thread:$0]  %s95, 16, %s97, [#allocation8]
    $region53: #{actor_forward.1} parent=1 // pred_fallthru
      _
    // Predicated region
    $region54: #{actor_forward.1} parent=1 // pred_check
      _
    $region55: #{actor_forward.1} parent=1 // pred_check_branch
      %101 = sbr.rel (0) target = $region57
    $region56: #{actor_forward.1} parent=1 // pred_region
      _
    $region57: #{actor_forward.1} parent=1 // pred_fallthru
      _
    // Predicated region
    $region58: #{actor_forward.1} parent=1 // pred_check
      _
    $region59: #{actor_forward.1} parent=1 // pred_check_branch
      %103 = sbr.rel (0) target = $region61
    $region60: #{actor_forward.1} parent=1 // pred_region
      _
    $region61: #{actor_forward.1} parent=1 // pred_fallthru
      _
    // Predicated region
    $region62: #{actor_forward.1} parent=1 // pred_check
      _
    $region63: #{actor_forward.1} parent=1 // pred_check_branch
      %105 = sbr.rel (0) target = $region65
    $region64: #{actor_forward.1} parent=1 // pred_region
      %107 = dma.done [#allocation3], 256
    $region65: #{actor_forward.1} parent=1 // pred_fallthru
      _
    // Predicated region
    $region66: #{actor_forward.1} parent=1 // pred_check
      _
    $region67: #{actor_forward.1} parent=1 // pred_check_branch
      %109 = sbr.rel (0) target = $region69
    $region68: #{actor_forward.1} parent=1 // pred_region
      %111 = dma.done [#allocation5], 256
    $region69: #{actor_forward.1} parent=1 // pred_fallthru
      _
    // Predicated region
    $region70: #{actor_forward.1} parent=1 // pred_check
      _
    $region71: #{actor_forward.1} parent=1 // pred_check_branch
      %113 = sbr.rel (0) target = $region73
    $region72: #{actor_forward.1} parent=1 // pred_region
      %115 = dma.done [#allocation5], 256
    $region73: #{actor_forward.1} parent=1 // pred_fallthru
      _
    // Predicated region
    $region74: #{actor_forward.1} parent=1 // pred_check
      _
    $region75: #{actor_forward.1} parent=1 // pred_check_branch
      %117 = sbr.rel (0) target = $region77
    $region76: #{actor_forward.1} parent=1 // pred_region
      %119 = dma.done [#allocation8], 16
    $region77: #{actor_forward.1} parent=1 // pred_fallthru
      _
    // Predicated region
    $region78: #{actor_forward.1} parent=1 // pred_check
      _
    $region79: #{actor_forward.1} parent=1 // pred_check_branch
      %121 = sbr.rel (0) target = $region81
    $region80: #{actor_forward.1} parent=1 // pred_region
      %123 = dma.done [#allocation8], 16
    $region81: #{actor_forward.1} parent=1 // pred_fallthru
      _
    %v125 = vld [vmem:[%s0] sm:$0xff]
    %v126 = vld [vmem:[%s0 + $0x8] sm:$0xff]
    %v127 = vpack.c.bf16 %v126, %v125
    %v128 = vld [vmem:[#allocation2] sm:$0xf]
    %v129 = vld [vmem:[#allocation2 + $0x4] sm:$0xf]
    %v130 = vld [vmem:[#allocation2 + $0x8] sm:$0xf]
    %v131 = vld [vmem:[#allocation2 + $0xc] sm:$0xf]
    %v132 = vld [vmem:[%s2] sm:$0x1]
    %v134 = vperm.slane %v132, 0
    %v140 = vunpack.c.l.b16 %v128
    %v141 = vunpack.c.l.b16 %v129
    %v142 = vunpack.c.l.b16 %v130
    %v143 = vunpack.c.l.b16 %v131
    %v144 = vpack.c.b16 %v141, %v140
    %v145 = vpack.c.b16 %v143, %v142
    %vm148 = vcmask 261120
    %v150 = vsel %vm148, %v127, 0
    %152 = vmatpush.bf16.msra.mxu0 0
    %153 = vmatpush.bf16.msra.mxu0 0
    %154 = vmatpush.bf16.msra.mxu0 0
    %155 = vmatpush.bf16.msra.mxu0 0
    %156 = vmatpush.bf16.msra.mxu0 0
    %157 = vmatpush.bf16.msra.mxu0 0
    %158 = vmatpush.bf16.msra.mxu0 %v145
    %159 = vmatpush.bf16.msra.mxu0 %v144
    %160 = vmatmul.bf16.gmra.mxu0 %v150
    %v161 = vpop.f32.mrf.mxu0
    %v162 = vadd.f32 %v134, %v161
    %v163 = vpop.f32.mrf.mxu0
    %v164 = vadd.f32 %v134, %v163
    %165 = vdwg.mxu0
    %v166 = vmax.f32 %v162, 0.0
    %v167 = vmax.f32 %v164, 0.0
    %v168 = vsel %vm148, %v166, 0.0
    %169 = vadd.xlane.f32.xlu0 %v168
    %v170 = vpop.xlane.xlu0 %169
    %v171 = vsel %vm148, %v167, 0.0
    %172 = vadd.xlane.f32.xlu0 %v171
    %v173 = vpop.xlane.xlu0 %172
    %v174 = vrcp.pop 32.0
    %v175 = vmul.f32 32.0, %v174
    %v176 = vsub.f32 1.0, %v175
    %v177 = vmul.f32 %v174, %v176
    %v178 = vadd.f32 %v174, %v177
    %vm179 = vweird.f32 %v174
    %v180 = vsel %vm179, %v174, %v178
    %v181 = vmul.f32 %v170, %v180
    %v182 = vmul.f32 %v173, %v180
    %v183 = vsub.f32 %v166, %v181
    %v184 = vsub.f32 %v167, %v182
    %v185 = vmul.f32 %v183, %v183
    %v186 = vmul.f32 %v184, %v184
    %v187 = vsel %vm148, %v185, 0.0
    %188 = vadd.xlane.f32.xlu0 %v187
    %v189 = vpop.xlane.xlu0 %188
    %v190 = vsel %vm148, %v186, 0.0
    %191 = vadd.xlane.f32.xlu0 %v190
    %v192 = vpop.xlane.xlu0 %191
    %v193 = vmul.f32 %v189, %v180
    %v194 = vmul.f32 %v192, %v180
    %v195 = vadd.f32 %v193, 1e-05
    %v196 = vadd.f32 %v194, 1e-05
    %v197 = vrsqrt.pop %v195
    %v198 = vmul.f32 %v197, %v195
    %v199 = vmul.f32 %v198, %v197
    %v200 = vmul.f32 0.5, %v199
    %v201 = vsub.f32 1.5, %v200
    %v202 = vmul.f32 %v197, %v201
    %vm203 = vweird.f32 %v195
    %vm204 = vweird.f32 %v197
    %vm205 = vmor %vm203, %vm204
    %v206 = vsel %vm205, %v197, %v202
    %v207 = vrsqrt.pop %v196
    %v208 = vmul.f32 %v207, %v196
    %v209 = vmul.f32 %v208, %v207
    %v210 = vmul.f32 0.5, %v209
    %v211 = vsub.f32 1.5, %v210
    %v212 = vmul.f32 %v207, %v211
    %vm213 = vweird.f32 %v196
    %vm214 = vweird.f32 %v207
    %vm215 = vmor %vm213, %vm214
    %v216 = vsel %vm215, %v207, %v212
    %v217 = vmul.f32 %v183, %v206
    %v218 = vmul.f32 %v184, %v216
    %v219 = vld [vmem:[%s3] sm:$0x1]
    %v221 = vperm.slane %v219, 0
    %v223 = vmul.f32 %v217, %v221
    %v224 = vmul.f32 %v218, %v221
    %v225 = vld [vmem:[%s4] sm:$0x1]
    %v227 = vperm.slane %v225, 0
    %v229 = vadd.f32 %v223, %v227
    %v230 = vadd.f32 %v224, %v227
    %v231 = vpack.c.bf16 %v230, %v229
    %v232 = vld [vmem:[#allocation4] sm:$0xf]
    %v233 = vld [vmem:[#allocation4 + $0x4] sm:$0xf]
    %v234 = vld [vmem:[#allocation4 + $0x8] sm:$0xf]
    %v235 = vld [vmem:[#allocation4 + $0xc] sm:$0xf]
    %v236 = vld [vmem:[%s6] sm:$0x1]
    %v238 = vperm.slane %v236, 0
    %v244 = vunpack.c.l.b16 %v232
    %v245 = vunpack.c.l.b16 %v233
    %v246 = vunpack.c.l.b16 %v234
    %v247 = vunpack.c.l.b16 %v235
    %v248 = vpack.c.b16 %v245, %v244
    %v249 = vpack.c.b16 %v247, %v246
    %v253 = vsel %vm148, %v231, 0
    %255 = vmatpush.bf16.msra.mxu0 0
    %256 = vmatpush.bf16.msra.mxu0 0
    %257 = vmatpush.bf16.msra.mxu0 0
    %258 = vmatpush.bf16.msra.mxu0 0
    %259 = vmatpush.bf16.msra.mxu0 0
    %260 = vmatpush.bf16.msra.mxu0 0
    %261 = vmatpush.bf16.msra.mxu0 %v249
    %262 = vmatpush.bf16.msra.mxu0 %v248
    %263 = vmatmul.bf16.gmra.mxu0 %v253
    %v264 = vpop.f32.mrf.mxu0
    %v265 = vadd.f32 %v238, %v264
    %v266 = vpop.f32.mrf.mxu0
    %v267 = vadd.f32 %v238, %v266
    %268 = vdwg.mxu0
    %v269 = vmax.f32 %v265, 0.0
    %v270 = vmax.f32 %v267, 0.0
    %v271 = vsel %vm148, %v269, 0.0
    %272 = vadd.xlane.f32.xlu0 %v271
    %v273 = vpop.xlane.xlu0 %272
    %v274 = vsel %vm148, %v270, 0.0
    %275 = vadd.xlane.f32.xlu0 %v274
    %v276 = vpop.xlane.xlu0 %275
    %v277 = vmul.f32 %v273, %v180
    %v278 = vmul.f32 %v276, %v180
    %v279 = vsub.f32 %v269, %v277
    %v280 = vsub.f32 %v270, %v278
    %v281 = vmul.f32 %v279, %v279
    %v282 = vmul.f32 %v280, %v280
    %v283 = vsel %vm148, %v281, 0.0
    %284 = vadd.xlane.f32.xlu0 %v283
    %v285 = vpop.xlane.xlu0 %284
    %v286 = vsel %vm148, %v282, 0.0
    %287 = vadd.xlane.f32.xlu0 %v286
    %v288 = vpop.xlane.xlu0 %287
    %v289 = vmul.f32 %v285, %v180
    %v290 = vmul.f32 %v288, %v180
    %v291 = vadd.f32 %v289, 1e-05
    %v292 = vadd.f32 %v290, 1e-05
    %v293 = vrsqrt.pop %v291
    %v294 = vmul.f32 %v293, %v291
    %v295 = vmul.f32 %v294, %v293
    %v296 = vmul.f32 0.5, %v295
    %v297 = vsub.f32 1.5, %v296
    %v298 = vmul.f32 %v293, %v297
    %vm299 = vweird.f32 %v291
    %vm300 = vweird.f32 %v293
    %vm301 = vmor %vm299, %vm300
    %v302 = vsel %vm301, %v293, %v298
    %v303 = vrsqrt.pop %v292
    %v304 = vmul.f32 %v303, %v292
    %v305 = vmul.f32 %v304, %v303
    %v306 = vmul.f32 0.5, %v305
    %v307 = vsub.f32 1.5, %v306
    %v308 = vmul.f32 %v303, %v307
    %vm309 = vweird.f32 %v292
    %vm310 = vweird.f32 %v303
    %vm311 = vmor %vm309, %vm310
    %v312 = vsel %vm311, %v303, %v308
    %v313 = vmul.f32 %v279, %v302
    %v314 = vmul.f32 %v280, %v312
    %v315 = vld [vmem:[%s7] sm:$0x1]
    %v317 = vperm.slane %v315, 0
    %v319 = vmul.f32 %v313, %v317
    %v320 = vmul.f32 %v314, %v317
    %v321 = vld [vmem:[%s8] sm:$0x1]
    %v323 = vperm.slane %v321, 0
    %v325 = vadd.f32 %v319, %v323
    %v326 = vadd.f32 %v320, %v323
    %v327 = vpack.c.bf16 %v326, %v325
    %v328 = vld [vmem:[#allocation6] sm:$0xf]
    %v329 = vld [vmem:[#allocation6 + $0x4] sm:$0xf]
    %v330 = vld [vmem:[#allocation6 + $0x8] sm:$0xf]
    %v331 = vld [vmem:[#allocation6 + $0xc] sm:$0xf]
    %v332 = vld [vmem:[%s10] sm:$0x1]
    %v334 = vperm.slane %v332, 0
    %v340 = vunpack.c.l.b16 %v328
    %v341 = vunpack.c.l.b16 %v329
    %v342 = vunpack.c.l.b16 %v330
    %v343 = vunpack.c.l.b16 %v331
    %v344 = vpack.c.b16 %v341, %v340
    %v345 = vpack.c.b16 %v343, %v342
    %v349 = vsel %vm148, %v327, 0
    %351 = vmatpush.bf16.msra.mxu0 0
    %352 = vmatpush.bf16.msra.mxu0 0
    %353 = vmatpush.bf16.msra.mxu0 0
    %354 = vmatpush.bf16.msra.mxu0 0
    %355 = vmatpush.bf16.msra.mxu0 0
    %356 = vmatpush.bf16.msra.mxu0 0
    %357 = vmatpush.bf16.msra.mxu0 %v345
    %358 = vmatpush.bf16.msra.mxu0 %v344
    %359 = vmatmul.bf16.gmra.mxu0 %v349
    %v360 = vpop.f32.mrf.mxu0
    %v361 = vadd.f32 %v334, %v360
    %v362 = vpop.f32.mrf.mxu0
    %v363 = vadd.f32 %v334, %v362
    %364 = vdwg.mxu0
    %v365 = vmax.f32 %v361, 0.0
    %v366 = vmax.f32 %v363, 0.0
    %v367 = vsel %vm148, %v365, 0.0
    %368 = vadd.xlane.f32.xlu0 %v367
    %v369 = vpop.xlane.xlu0 %368
    %v370 = vsel %vm148, %v366, 0.0
    %371 = vadd.xlane.f32.xlu0 %v370
    %v372 = vpop.xlane.xlu0 %371
    %v373 = vmul.f32 %v369, %v180
    %v374 = vmul.f32 %v372, %v180
    %v375 = vsub.f32 %v365, %v373
    %v376 = vsub.f32 %v366, %v374
    %v377 = vmul.f32 %v375, %v375
    %v378 = vmul.f32 %v376, %v376
    %v379 = vsel %vm148, %v377, 0.0
    %380 = vadd.xlane.f32.xlu0 %v379
    %v381 = vpop.xlane.xlu0 %380
    %v382 = vsel %vm148, %v378, 0.0
    %383 = vadd.xlane.f32.xlu0 %v382
    %v384 = vpop.xlane.xlu0 %383
    %v385 = vmul.f32 %v381, %v180
    %v386 = vmul.f32 %v384, %v180
    %v387 = vadd.f32 %v385, 1e-05
    %v388 = vadd.f32 %v386, 1e-05
    %v389 = vrsqrt.pop %v387
    %v390 = vmul.f32 %v389, %v387
    %v391 = vmul.f32 %v390, %v389
    %v392 = vmul.f32 0.5, %v391
    %v393 = vsub.f32 1.5, %v392
    %v394 = vmul.f32 %v389, %v393
    %vm395 = vweird.f32 %v387
    %vm396 = vweird.f32 %v389
    %vm397 = vmor %vm395, %vm396
    %v398 = vsel %vm397, %v389, %v394
    %v399 = vrsqrt.pop %v388
    %v400 = vmul.f32 %v399, %v388
    %v401 = vmul.f32 %v400, %v399
    %v402 = vmul.f32 0.5, %v401
    %v403 = vsub.f32 1.5, %v402
    %v404 = vmul.f32 %v399, %v403
    %vm405 = vweird.f32 %v388
    %vm406 = vweird.f32 %v399
    %vm407 = vmor %vm405, %vm406
    %v408 = vsel %vm407, %v399, %v404
    %v409 = vmul.f32 %v375, %v398
    %v410 = vmul.f32 %v376, %v408
    %v411 = vld [vmem:[#allocation7] sm:$0x1]
    %v413 = vperm.slane %v411, 0
    %v415 = vmul.f32 %v409, %v413
    %v416 = vmul.f32 %v410, %v413
    %v417 = vld [vmem:[#allocation9] sm:$0x1]
    %v419 = vperm.slane %v417, 0
    %v421 = vadd.f32 %v415, %v419
    %v422 = vadd.f32 %v416, %v419
    %v423 = vpack.c.bf16 %v422, %v421
    %v424 = vld [vmem:[%s13] sm:$0xf]
    %v425 = vld [vmem:[%s13 + $0x4] sm:$0xf]
    %v426 = vld [vmem:[%s13 + $0x8] sm:$0xf]
    %v427 = vld [vmem:[%s13 + $0xc] sm:$0xf]
    %v428 = vld [vmem:[%s14] sm:$0x1]
    %v430 = vperm.slane %v428, 0
    %v436 = vunpack.c.l.b16 %v424
    %v437 = vunpack.c.l.b16 %v425
    %v438 = vunpack.c.l.b16 %v426
    %v439 = vunpack.c.l.b16 %v427
    %v440 = vpack.c.b16 %v437, %v436
    %v441 = vpack.c.b16 %v439, %v438
    %v445 = vsel %vm148, %v423, 0
    %447 = vmatpush.bf16.msra.mxu0 0
    %448 = vmatpush.bf16.msra.mxu0 0
    %449 = vmatpush.bf16.msra.mxu0 0
    %450 = vmatpush.bf16.msra.mxu0 0
    %451 = vmatpush.bf16.msra.mxu0 0
    %452 = vmatpush.bf16.msra.mxu0 0
    %453 = vmatpush.bf16.msra.mxu0 %v441
    %454 = vmatpush.bf16.msra.mxu0 %v440
    %455 = vmatmul.bf16.gmra.mxu0 %v445
    %v456 = vpop.f32.mrf.mxu0
    %v457 = vadd.f32 %v430, %v456
    %v458 = vpop.f32.mrf.mxu0
    %v459 = vadd.f32 %v430, %v458
    %460 = vdwg.mxu0
    %v461 = vtanh.pop %v457
    %v462 = vtanh.pop %v459
    %vm463 = vcmask 64512
    %464 = vst.msk [vmem:[%s15] sm:$0xff] %vm463, %v461
    %465 = vst.msk [vmem:[%s15 + $0x8] sm:$0xff] %vm463, %v462
    // Predicated region
    $region82: #{actor_forward.1} parent=1 // pred_check
      _
    $region83: #{actor_forward.1} parent=1 // pred_check_branch
      %467 = sbr.rel (0) target = $region85
    $region84: #{actor_forward.1} parent=1 // pred_region
      _
    $region85: #{actor_forward.1} parent=1 // pred_fallthru
      _
    // Predicated region
    $region86: #{actor_forward.1} parent=1 // pred_check
      _
    $region87: #{actor_forward.1} parent=1 // pred_check_branch
      %469 = sbr.rel (0) target = $region89
    $region88: #{actor_forward.1} parent=1 // pred_region
      _
    $region89: #{actor_forward.1} parent=1 // pred_fallthru
      _
    %470 = vsyncpa [#allocation3], 1
    %471 = vsyncpa [#allocation5], 1
    %472 = vsyncpa [#allocation8], 1

</llo_original>
